<compile_context>
chip_gen: v7x
topology: tpu7x:2x2x1
jax: 0.10.0
libtpu: 0.0.40
codegen_flags: <defaults>
</compile_context>

<pallas_src>
import functools

import numpy as np

import jax
import jax.numpy as jnp
from jax.experimental import pallas as pl
from jax.experimental.pallas import tpu as pltpu

LN_EPS = 1e-5
LANE = 128


def _attention_kernel(x_ref, wqkv_ref, bqkv_ref, wo_ref, bo_ref,
                      cos_ref, sin_ref, o_ref,
                      *, bb, n, dim_in, dqk_p, dv_p, dout_p):
    # x block: (BB, N, Din_p) -> flatten to (BB*N, Din_p) so every matmul runs
    # with M = BB*N rows on the MXU.
    m = bb * n
    x = x_ref[...].reshape(m, x_ref.shape[-1]).astype(jnp.float32)

    # ---- LayerNorm stats over the *real* dim_in ----
    # Padded lanes are zero so the sums are unaffected; var = E[x^2] - mean^2
    # keeps the zero padding out of the variance entirely.
    inv_d = 1.0 / dim_in
    mean = jnp.sum(x, axis=-1, keepdims=True) * inv_d
    var = jnp.sum(x * x, axis=-1, keepdims=True) * inv_d - mean * mean
    xh = ((x - mean) * jax.lax.rsqrt(var + LN_EPS)).astype(jnp.bfloat16)

    # ---- fused q/k/v projection ----
    # gamma/beta and the 1/sqrt(dqk) scale are already folded into wqkv/bqkv.
    # bf16 operands, f32 accumulation.
    qkv = jnp.dot(xh, wqkv_ref[...], preferred_element_type=jnp.float32)
    qkv = qkv + bqkv_ref[...]
    q = qkv[:, :dqk_p]
    k = qkv[:, dqk_p:2 * dqk_p]
    v = qkv[:, 2 * dqk_p:]

    # ---- rotary positional encoding on q, k ----
    # In the permuted column layout the rotary partner of lane l is lane
    # (l + dqk_p//2) % dqk_p, so rotate_half is one XLU lane roll (shift of
    # exactly half the axis, hence direction-independent).  Non-rotated and
    # padded lanes have cos=1 / sin=0.
    half = dqk_p // 2
    cos = cos_ref[...]
    sin = sin_ref[...]
    q = q * cos + pltpu.roll(q, half, 1) * sin
    k = k * cos + pltpu.roll(k, half, 1) * sin

    # ---- scaled dot-product attention (scale folded into q), batched over BB.
    qb = q.reshape(bb, n, dqk_p).astype(jnp.bfloat16)
    kb = k.reshape(bb, n, dqk_p).astype(jnp.bfloat16)
    vb = v.reshape(bb, n, dv_p).astype(jnp.bfloat16)
    dots = jnp.einsum("bqd,bkd->bqk", qb, kb, preferred_element_type=jnp.float32)
    dots = dots - jnp.max(dots, axis=-1, keepdims=True)
    e = jnp.exp(dots)
    attn = e * pl.reciprocal(jnp.sum(e, axis=-1, keepdims=True), approx=True)
    out = jnp.einsum("bqk,bkd->bqd", attn.astype(jnp.bfloat16), vb,
                     preferred_element_type=jnp.float32)

    # ---- output projection back at M = BB*N, lane-dense store ----
    out = out.reshape(m, dv_p).astype(jnp.bfloat16)
    y = jnp.dot(out, wo_ref[...], preferred_element_type=jnp.float32) + bo_ref[...]
    o_ref[...] = y.reshape(bb, n, dout_p).astype(o_ref.dtype)


def _rotary_lane_layout(seq_len, dim_qk, dqk_p):
    """Column permutation + cos / signed-sin tables realizing
    rotary_embedding_torch's RotaryEmbedding(dim=dim_qk//2).rotate_queries_or_keys
    after the q/k feature columns are re-laid-out so every rotary pair sits at
    lanes (i, i + dqk_p//2).

    Returns:
      perm: (dim_qk,) int32 -- original q/k column c lives at lane perm[c]
      cos : (seq_len, dqk_p) f32
      sin : (seq_len, dqk_p) f32 with the rotate_half sign folded in
            (-sin on the even-member lane, +sin on the odd-member lane).
    """
    half = dqk_p // 2
    rot = dim_qk // 2                       # RotaryEmbedding(dim=dim_qk//2)
    assert rot % 2 == 0, "rotary dim must be even"
    n_pairs = rot // 2
    inv_freq = 1.0 / (10000.0 ** (np.arange(0, rot, 2, dtype=np.float32) / rot))

    # pair members (2i, 2i+1) -> lanes (i, half+i); the non-rotated tail
    # (columns rot..dim_qk-1) fills the remaining free lanes (cos=1, sin=0).
    perm = np.zeros((dim_qk,), np.int32)
    perm[0:rot:2] = np.arange(n_pairs)
    perm[1:rot:2] = half + np.arange(n_pairs)
    free = list(range(n_pairs, half)) + list(range(half + n_pairs, dqk_p))
    perm[rot:] = np.asarray(free[:dim_qk - rot], np.int32)

    t = np.arange(seq_len, dtype=np.float32)
    ang = t[:, None] * inv_freq[None, :]                    # (N, n_pairs)
    cos = np.ones((seq_len, dqk_p), np.float32)
    sin = np.zeros((seq_len, dqk_p), np.float32)
    cos[:, :n_pairs] = np.cos(ang)
    cos[:, half:half + n_pairs] = np.cos(ang)
    sin[:, :n_pairs] = -np.sin(ang)
    sin[:, half:half + n_pairs] = np.sin(ang)
    return jnp.asarray(perm), jnp.asarray(cos), jnp.asarray(sin)


def single_head_self_attention(x, params):
    """x: (B, N, dim_in) float32 -> (B, N, dim_out) float32."""
    B, N, dim_in = x.shape
    wq, wk, wv = params["wq"], params["wk"], params["wv"]
    wo, bo = params["wo"], params["bo"]
    gamma = params["gamma"].reshape(-1)
    beta = params["beta"].reshape(-1)
    dim_qk, dim_v, dim_out = wq.shape[1], wv.shape[1], wo.shape[1]
    scale = float(dim_qk) ** (-0.5)

    rup = lambda d: -(-d // LANE) * LANE                      # round up to 128
    din_p, dqk_p, dv_p, dout_p = rup(dim_in), rup(dim_qk), rup(dim_v), rup(dim_out)

    # ---- constant folds (wrapper side, one-time) ----
    # LayerNorm affine folded into the projections, attention scale into q.
    wq_f = gamma[:, None] * wq * scale
    wk_f = gamma[:, None] * wk
    wv_f = gamma[:, None] * wv
    bq_f = (beta @ wq) * scale
    bk_f = beta @ wk
    bv_f = beta @ wv

    perm, cos, sin = _rotary_lane_layout(N, dim_qk, dqk_p)

    def scatter_w(w, cols_p, col_perm=None):
        idx = col_perm if col_perm is not None else jnp.arange(w.shape[1])
        return jnp.zeros((din_p, cols_p), jnp.float32).at[:dim_in, idx].set(w)

    def scatter_b(b, cols_p, col_perm=None):
        idx = col_perm if col_perm is not None else jnp.arange(b.shape[0])
        return jnp.zeros((cols_p,), jnp.float32).at[idx].set(b)

    w_qkv = jnp.concatenate(
        [scatter_w(wq_f, dqk_p, perm), scatter_w(wk_f, dqk_p, perm),
         scatter_w(wv_f, dv_p)], axis=1).astype(jnp.bfloat16)
    b_qkv = jnp.concatenate(
        [scatter_b(bq_f, dqk_p, perm), scatter_b(bk_f, dqk_p, perm),
         scatter_b(bv_f, dv_p)])[None, :].astype(jnp.float32)
    wo_p = (jnp.zeros((dv_p, dout_p), jnp.float32)
            .at[:dim_v, :dim_out].set(wo).astype(jnp.bfloat16))
    bo_p = jnp.zeros((1, dout_p), jnp.float32).at[0, :dim_out].set(bo.reshape(-1))

    # Batch block per grid step (LN / projections run on BB*N flattened rows).
    BB = next(bb for bb in (8, 4, 2, 1) if B % bb == 0)
    cos_t = jnp.tile(cos, (BB, 1))
    sin_t = jnp.tile(sin, (BB, 1))

    x_p = jnp.pad(x, ((0, 0), (0, 0), (0, din_p - dim_in))).astype(jnp.float32)

    kernel = functools.partial(_attention_kernel, bb=BB, n=N, dim_in=dim_in,
                               dqk_p=dqk_p, dv_p=dv_p, dout_p=dout_p)
    const = lambda a: pl.BlockSpec(a.shape, lambda i, _nd=a.ndim: (0,) * _nd)

    y_p = pl.pallas_call(
        kernel,
        out_shape=jax.ShapeDtypeStruct((B, N, dout_p), jnp.float32),
        grid_spec=pltpu.PrefetchScalarGridSpec(
            num_scalar_prefetch=0,
            grid=(B // BB,),
            in_specs=[
                pl.BlockSpec((BB, N, din_p), lambda i: (i, 0, 0)),   # x block
                const(w_qkv), const(b_qkv), const(wo_p), const(bo_p),
                const(cos_t), const(sin_t),
            ],
            out_specs=pl.BlockSpec((BB, N, dout_p), lambda i: (i, 0, 0)),
        ),
        compiler_params=pltpu.CompilerParams(
            dimension_semantics=("parallel",)),
    )(x_p, w_qkv, b_qkv, wo_p, bo_p, cos_t, sin_t)
    return y_p[..., :dim_out]


def _reference(x, params):
    """Pure-JAX f32 reference of the PyTorch forward pass (interleaved rotary)."""
    B, N, dim_in = x.shape
    dim_qk = params["wq"].shape[1]
    scale = float(dim_qk) ** (-0.5)
    g = params["gamma"].reshape(-1)
    b = params["beta"].reshape(-1)

    mean = jnp.mean(x, axis=-1, keepdims=True)
    var = jnp.mean((x - mean) ** 2, axis=-1, keepdims=True)
    xh = (x - mean) / jnp.sqrt(var + LN_EPS) * g + b
    q = xh @ params["wq"]
    k = xh @ params["wk"]
    v = xh @ params["wv"]

    # rotary_embedding_torch: rotate only the first dim_qk//2 features,
    # interleaved pairs, theta = 10000.
    rot = dim_qk // 2
    inv_freq = 1.0 / (10000.0 ** (jnp.arange(0, rot, 2, dtype=jnp.float32) / rot))
    ang = jnp.arange(N, dtype=jnp.float32)[:, None] * inv_freq[None, :]
    cos = jnp.repeat(jnp.cos(ang), 2, axis=-1)          # (N, rot)
    sin = jnp.repeat(jnp.sin(ang), 2, axis=-1)

    def rope(t):
        tr, tp = t[..., :rot], t[..., rot:]
        t2 = tr.reshape(*tr.shape[:-1], rot // 2, 2)
        rh = jnp.stack([-t2[..., 1], t2[..., 0]], axis=-1).reshape(tr.shape)
        return jnp.concatenate([tr * cos + rh * sin, tp], axis=-1)

    q, k = rope(q), rope(k)
    dots = jnp.einsum("bqd,bkd->bqk", q, k) * scale
    attn = jax.nn.softmax(dots, axis=-1)
    out = jnp.einsum("bqk,bkd->bqd", attn, v)
    return out @ params["wo"] + params["bo"]


if __name__ == "__main__":
    # Small shapes consistent with the PyTorch module.
    B, N = 2, 8
    dim_in, dim_qk, dim_v, dim_out = 32, 32, 32, 32

    key = jax.random.PRNGKey(0)
    ks = jax.random.split(key, 8)
    x = jax.random.normal(ks[0], (B, N, dim_in), jnp.float32)

    # Weights stored pre-transposed: (in_features, out_features).
    params = {
        "wq": jax.random.normal(ks[1], (dim_in, dim_qk), jnp.float32) * 0.1,
        "wk": jax.random.normal(ks[2], (dim_in, dim_qk), jnp.float32) * 0.1,
        "wv": jax.random.normal(ks[3], (dim_in, dim_v), jnp.float32) * 0.1,
        "wo": jax.random.normal(ks[4], (dim_v, dim_out), jnp.float32) * 0.1,
        "bo": jax.random.normal(ks[5], (1, dim_out), jnp.float32) * 0.1,
        "gamma": 1.0 + 0.05 * jax.random.normal(ks[6], (1, dim_in), jnp.float32),
        "beta": 0.05 * jax.random.normal(ks[7], (1, dim_in), jnp.float32),
    }

    y = single_head_self_attention(x, params)
    y = jax.block_until_ready(y)
    y_ref = _reference(x, params)

    assert y.shape == (B, N, dim_out)
    # bf16 MXU operands + approx reciprocal -> compare at bf16-level tolerance.
    err = float(jnp.max(jnp.abs(y - y_ref)))
    assert jnp.allclose(y, y_ref, atol=2e-2, rtol=2e-2), (
        f"mismatch vs f32 JAX reference, max abs err {err}")
    print("KERNEL_OK")
</pallas_src>

<mosaic_0001>
module attributes {stable_mosaic.version = 11 : i64} {
  func.func @_attention_kernel(%arg0: i32, %arg1: memref<2x8x128xf32, #tpu.memory_space<vmem>>, %arg2: memref<128x384xbf16, #tpu.memory_space<vmem>>, %arg3: memref<1x384xf32, #tpu.memory_space<vmem>>, %arg4: memref<128x128xbf16, #tpu.memory_space<vmem>>, %arg5: memref<1x128xf32, #tpu.memory_space<vmem>>, %arg6: memref<16x128xf32, #tpu.memory_space<vmem>>, %arg7: memref<16x128xf32, #tpu.memory_space<vmem>>, %arg8: memref<2x8x128xf32, #tpu.memory_space<vmem>>) attributes {dimension_semantics = [#tpu.dimension_semantics<parallel>], iteration_bounds = array<i64: 1>, scalar_prefetch = 0 : i64, scratch_operands = 0 : i64, tpu.core_type = #tpu.core_type<tc>, window_params = [{transform_indices = @transform_0, window_bounds = array<i64: 2, 8, 128>}, {pipeline_mode = #tpu.pipeline_mode<synchronous>, transform_indices = @transform_1, window_bounds = array<i64: 128, 384>}, {pipeline_mode = #tpu.pipeline_mode<synchronous>, transform_indices = @transform_2, window_bounds = array<i64: 1, 384>}, {pipeline_mode = #tpu.pipeline_mode<synchronous>, transform_indices = @transform_3, window_bounds = array<i64: 128, 128>}, {pipeline_mode = #tpu.pipeline_mode<synchronous>, transform_indices = @transform_4, window_bounds = array<i64: 1, 128>}, {pipeline_mode = #tpu.pipeline_mode<synchronous>, transform_indices = @transform_5, window_bounds = array<i64: 16, 128>}, {pipeline_mode = #tpu.pipeline_mode<synchronous>, transform_indices = @transform_6, window_bounds = array<i64: 16, 128>}, {transform_indices = @transform_7, window_bounds = array<i64: 2, 8, 128>}]} {
    %c0 = arith.constant 0 : index
    %c0_0 = arith.constant 0 : index
    %c0_1 = arith.constant 0 : index
    %0 = vector.load %arg1[%c0, %c0_0, %c0_1] : memref<2x8x128xf32, #tpu.memory_space<vmem>>, vector<2x8x128xf32>
    %1 = vector.shape_cast %0 : vector<2x8x128xf32> to vector<16x128xf32>
    %cst = arith.constant dense<0.000000e+00> : vector<16xf32>
    %2 = vector.multi_reduction <add>, %1, %cst [1] : vector<16x128xf32> to vector<16xf32>
    %3 = vector.shape_cast %2 : vector<16xf32> to vector<16x1xf32>
    %cst_2 = arith.constant 3.125000e-02 : f32
    %4 = vector.broadcast %cst_2 : f32 to vector<16x1xf32>
    %5 = arith.mulf %3, %4 : vector<16x1xf32>
    %6 = arith.mulf %1, %1 : vector<16x128xf32>
    %cst_3 = arith.constant dense<0.000000e+00> : vector<16xf32>
    %7 = vector.multi_reduction <add>, %6, %cst_3 [1] : vector<16x128xf32> to vector<16xf32>
    %8 = vector.shape_cast %7 : vector<16xf32> to vector<16x1xf32>
    %cst_4 = arith.constant 3.125000e-02 : f32
    %9 = vector.broadcast %cst_4 : f32 to vector<16x1xf32>
    %10 = arith.mulf %8, %9 : vector<16x1xf32>
    %11 = arith.mulf %5, %5 : vector<16x1xf32>
    %12 = arith.subf %10, %11 : vector<16x1xf32>
    %13 = vector.broadcast %5 : vector<16x1xf32> to vector<16x128xf32>
    %14 = arith.subf %1, %13 : vector<16x128xf32>
    %cst_5 = arith.constant 9.99999974E-6 : f32
    %15 = vector.broadcast %cst_5 : f32 to vector<16x1xf32>
    %16 = arith.addf %12, %15 : vector<16x1xf32>
    %17 = math.rsqrt %16 : vector<16x1xf32>
    %18 = vector.broadcast %17 : vector<16x1xf32> to vector<16x128xf32>
    %19 = arith.mulf %14, %18 : vector<16x128xf32>
    %20 = arith.truncf %19 : vector<16x128xf32> to vector<16x128xbf16>
    %c0_6 = arith.constant 0 : index
    %c0_7 = arith.constant 0 : index
    %21 = vector.load %arg2[%c0_6, %c0_7] : memref<128x384xbf16, #tpu.memory_space<vmem>>, vector<128x384xbf16>
    %cst_8 = arith.constant dense<0.000000e+00> : vector<16x384xf32>
    %22 = tpu.matmul %20, %21, %cst_8 {dimension_numbers = #tpu.dot_dimension_numbers<[1], [0], [0], [1], [0, 0, 1, 1], [], []>} : vector<16x128xbf16>, vector<128x384xbf16>, vector<16x384xf32> -> vector<16x384xf32>
    %c0_9 = arith.constant 0 : index
    %c0_10 = arith.constant 0 : index
    %23 = vector.load %arg3[%c0_9, %c0_10] : memref<1x384xf32, #tpu.memory_space<vmem>>, vector<1x384xf32>
    %24 = vector.broadcast %23 : vector<1x384xf32> to vector<16x384xf32>
    %25 = arith.addf %22, %24 : vector<16x384xf32>
    %26 = vector.extract_strided_slice %25 {offsets = [0, 0], sizes = [16, 128], strides = [1, 1]} : vector<16x384xf32> to vector<16x128xf32>
    %27 = vector.extract_strided_slice %25 {offsets = [0, 128], sizes = [16, 128], strides = [1, 1]} : vector<16x384xf32> to vector<16x128xf32>
    %28 = vector.extract_strided_slice %25 {offsets = [0, 256], sizes = [16, 128], strides = [1, 1]} : vector<16x384xf32> to vector<16x128xf32>
    %c0_11 = arith.constant 0 : index
    %c0_12 = arith.constant 0 : index
    %29 = vector.load %arg6[%c0_11, %c0_12] : memref<16x128xf32, #tpu.memory_space<vmem>>, vector<16x128xf32>
    %c0_13 = arith.constant 0 : index
    %c0_14 = arith.constant 0 : index
    %30 = vector.load %arg7[%c0_13, %c0_14] : memref<16x128xf32, #tpu.memory_space<vmem>>, vector<16x128xf32>
    %31 = arith.mulf %26, %29 : vector<16x128xf32>
    %c64_i32 = arith.constant 64 : i32
    %32 = tpu.dynamic_rotate %26 by %c64_i32 dim 1 : vector<16x128xf32>, i32 -> vector<16x128xf32>
    %33 = arith.mulf %32, %30 : vector<16x128xf32>
    %34 = arith.addf %31, %33 : vector<16x128xf32>
    %35 = arith.mulf %27, %29 : vector<16x128xf32>
    %c64_i32_15 = arith.constant 64 : i32
    %36 = tpu.dynamic_rotate %27 by %c64_i32_15 dim 1 : vector<16x128xf32>, i32 -> vector<16x128xf32>
    %37 = arith.mulf %36, %30 : vector<16x128xf32>
    %38 = arith.addf %35, %37 : vector<16x128xf32>
    %39 = vector.shape_cast %34 : vector<16x128xf32> to vector<2x8x128xf32>
    %40 = arith.truncf %39 : vector<2x8x128xf32> to vector<2x8x128xbf16>
    %41 = vector.shape_cast %38 : vector<16x128xf32> to vector<2x8x128xf32>
    %42 = arith.truncf %41 : vector<2x8x128xf32> to vector<2x8x128xbf16>
    %43 = vector.shape_cast %28 : vector<16x128xf32> to vector<2x8x128xf32>
    %44 = arith.truncf %43 : vector<2x8x128xf32> to vector<2x8x128xbf16>
    "tpu.trace_start"() <{level = 10 : i32, message = "bqd,bkd->bqk"}> : () -> ()
    %cst_16 = arith.constant dense<0.000000e+00> : vector<2x8x8xf32>
    %45 = tpu.matmul %40, %42, %cst_16 {dimension_numbers = #tpu.dot_dimension_numbers<[2], [2], [1], [1], [0, 0, 0, 1, 1, 1], [0], [0]>} : vector<2x8x128xbf16>, vector<2x8x128xbf16>, vector<2x8x8xf32> -> vector<2x8x8xf32>
    "tpu.trace_stop"() : () -> ()
    %cst_17 = arith.constant dense<0xFF800000> : vector<2x8xf32>
    %46 = vector.multi_reduction <maximumf>, %45, %cst_17 [2] : vector<2x8x8xf32> to vector<2x8xf32>
    %47 = vector.shape_cast %46 : vector<2x8xf32> to vector<2x8x1xf32>
    %48 = vector.broadcast %47 : vector<2x8x1xf32> to vector<2x8x8xf32>
    %49 = arith.subf %45, %48 : vector<2x8x8xf32>
    %50 = math.exp %49 : vector<2x8x8xf32>
    %cst_18 = arith.constant dense<0.000000e+00> : vector<2x8xf32>
    %51 = vector.multi_reduction <add>, %50, %cst_18 [2] : vector<2x8x8xf32> to vector<2x8xf32>
    %52 = vector.shape_cast %51 : vector<2x8xf32> to vector<2x8x1xf32>
    %53 = tpu.reciprocal %52 {approx = true} : vector<2x8x1xf32> -> vector<2x8x1xf32>
    %54 = vector.broadcast %53 : vector<2x8x1xf32> to vector<2x8x8xf32>
    %55 = arith.mulf %50, %54 : vector<2x8x8xf32>
    %56 = arith.truncf %55 : vector<2x8x8xf32> to vector<2x8x8xbf16>
    "tpu.trace_start"() <{level = 10 : i32, message = "bqk,bkd->bqd"}> : () -> ()
    %cst_19 = arith.constant dense<0.000000e+00> : vector<2x8x128xf32>
    %57 = tpu.matmul %56, %44, %cst_19 {dimension_numbers = #tpu.dot_dimension_numbers<[2], [1], [1], [2], [0, 0, 0, 1, 1, 2], [0], [0]>} : vector<2x8x8xbf16>, vector<2x8x128xbf16>, vector<2x8x128xf32> -> vector<2x8x128xf32>
    "tpu.trace_stop"() : () -> ()
    %58 = vector.shape_cast %57 : vector<2x8x128xf32> to vector<16x128xf32>
    %59 = arith.truncf %58 : vector<16x128xf32> to vector<16x128xbf16>
    %c0_20 = arith.constant 0 : index
    %c0_21 = arith.constant 0 : index
    %60 = vector.load %arg4[%c0_20, %c0_21] : memref<128x128xbf16, #tpu.memory_space<vmem>>, vector<128x128xbf16>
    %cst_22 = arith.constant dense<0.000000e+00> : vector<16x128xf32>
    %61 = tpu.matmul %59, %60, %cst_22 {dimension_numbers = #tpu.dot_dimension_numbers<[1], [0], [0], [1], [0, 0, 1, 1], [], []>} : vector<16x128xbf16>, vector<128x128xbf16>, vector<16x128xf32> -> vector<16x128xf32>
    %c0_23 = arith.constant 0 : index
    %c0_24 = arith.constant 0 : index
    %62 = vector.load %arg5[%c0_23, %c0_24] : memref<1x128xf32, #tpu.memory_space<vmem>>, vector<1x128xf32>
    %63 = vector.broadcast %62 : vector<1x128xf32> to vector<16x128xf32>
    %64 = arith.addf %61, %63 : vector<16x128xf32>
    %65 = vector.shape_cast %64 : vector<16x128xf32> to vector<2x8x128xf32>
    %c0_25 = arith.constant 0 : index
    %c0_26 = arith.constant 0 : index
    %c0_27 = arith.constant 0 : index
    %66 = vector.load %arg8[%c0_25, %c0_26, %c0_27] : memref<2x8x128xf32, #tpu.memory_space<vmem>>, vector<2x8x128xf32>
    tpu.vector_store %arg8[%c0_25, %c0_26, %c0_27], %65 {strides = array<i32>} : memref<2x8x128xf32, #tpu.memory_space<vmem>>, vector<2x8x128xf32>,
    return
  }
  func.func @transform_0(%arg0: i32) -> (i32, i32, i32) {
    %c0_i32 = arith.constant 0 : i32
    %c0_i32_0 = arith.constant 0 : i32
    %c0_i32_1 = arith.constant 0 : i32
    return %arg0, %c0_i32, %c0_i32_0 : i32, i32, i32
  }
  func.func @transform_1(%arg0: i32) -> (i32, i32) {
    %c0_i32 = arith.constant 0 : i32
    %c0_i32_0 = arith.constant 0 : i32
    %c0_i32_1 = arith.constant 0 : i32
    return %c0_i32, %c0_i32_0 : i32, i32
  }
  func.func @transform_2(%arg0: i32) -> (i32, i32) {
    %c0_i32 = arith.constant 0 : i32
    %c0_i32_0 = arith.constant 0 : i32
    %c0_i32_1 = arith.constant 0 : i32
    return %c0_i32, %c0_i32_0 : i32, i32
  }
  func.func @transform_3(%arg0: i32) -> (i32, i32) {
    %c0_i32 = arith.constant 0 : i32
    %c0_i32_0 = arith.constant 0 : i32
    %c0_i32_1 = arith.constant 0 : i32
    return %c0_i32, %c0_i32_0 : i32, i32
  }
  func.func @transform_4(%arg0: i32) -> (i32, i32) {
    %c0_i32 = arith.constant 0 : i32
    %c0_i32_0 = arith.constant 0 : i32
    %c0_i32_1 = arith.constant 0 : i32
    return %c0_i32, %c0_i32_0 : i32, i32
  }
  func.func @transform_5(%arg0: i32) -> (i32, i32) {
    %c0_i32 = arith.constant 0 : i32
    %c0_i32_0 = arith.constant 0 : i32
    %c0_i32_1 = arith.constant 0 : i32
    return %c0_i32, %c0_i32_0 : i32, i32
  }
  func.func @transform_6(%arg0: i32) -> (i32, i32) {
    %c0_i32 = arith.constant 0 : i32
    %c0_i32_0 = arith.constant 0 : i32
    %c0_i32_1 = arith.constant 0 : i32
    return %c0_i32, %c0_i32_0 : i32, i32
  }
  func.func @transform_7(%arg0: i32) -> (i32, i32, i32) {
    %c0_i32 = arith.constant 0 : i32
    %c0_i32_0 = arith.constant 0 : i32
    %c0_i32_1 = arith.constant 0 : i32
    return %arg0, %c0_i32, %c0_i32_0 : i32, i32, i32
  }
}

</mosaic_0001>

<llo_original>
// kernel: tpu_custom_call.1
$region0: #{tpu_custom_call.1}
  #allocation0 [shape = 'u32[]', space=smem, size = 0x4, offset = 0x4, fixed_abs, tag = 'smem constant byte address 0x4 - core index']
  #allocation1 [shape = 'u32[144,128]{1,0:T(1,128)}', space=vmem, size = 0x12000, scoped, tag = 'internal scratch']
  %s0 = inlined_call_operand.hbm [shape: f32[2,8,128], index: 0, kind: input, shape index: {}]
  %s1 = inlined_call_operand.hbm [shape: bf16[128,384], index: 1, kind: input, shape index: {}]
  %s2 = inlined_call_operand.hbm [shape: f32[1,384], index: 2, kind: input, shape index: {}]
  %s3 = inlined_call_operand.hbm [shape: bf16[128,128], index: 3, kind: input, shape index: {}]
  %s4 = inlined_call_operand.vmem [shape: f32[1,128], index: 4, kind: input, shape index: {}]
  %s5 = inlined_call_operand.vmem [shape: f32[16,128], index: 5, kind: input, shape index: {}]
  %s6 = inlined_call_operand.hbm [shape: f32[16,128], index: 6, kind: input, shape index: {}]
  %s7 = inlined_call_operand.hbm [shape: f32[2,8,128], index: 7, kind: output, shape index: {}]
  %s8 = sld [smem:[#allocation0]]
  $region58: #{tpu_custom_call.1} parent=0
    _
  %s10 = ssub.s32 1, %s8
  %s11 = scalar_select 0, %s10, %s8
  $region1: #{tpu_custom_call.1} parent=0
    #allocation2 [shape = 'u8[8192]{0}', space=vmem, size = 0x2000, scoped, tag = 'input window, operand 0, single buffered']
    #allocation3 [shape = 's32[1]{0}', space=sflag, size = 0x4, scoped, tag = 'scoped memory for tpu_custom_call.1']
    #allocation4 [shape = 's32[1]{0}', space=sflag, size = 0x4, scoped, tag = 'scoped memory for tpu_custom_call.1']
    #allocation5 [shape = 'u8[98304]{0}', space=vmem, size = 0x18000, scoped, tag = 'input window, operand 1, single buffered']
    #allocation6 [shape = 's32[1]{0}', space=sflag, size = 0x4, scoped, tag = 'scoped memory for tpu_custom_call.1']
    #allocation7 [shape = 'u8[1536]{0}', space=vmem, size = 0x800, scoped, tag = 'input window, operand 2, single buffered']
    #allocation8 [shape = 'u8[32768]{0}', space=vmem, size = 0x8000, scoped, tag = 'input window, operand 3, single buffered']
    #allocation9 [shape = 's32[1]{0}', space=sflag, size = 0x4, scoped, tag = 'scoped memory for tpu_custom_call.1']
    #allocation10 [shape = 'u8[8192]{0}', space=vmem, size = 0x2000, scoped, tag = 'input window, operand 6, single buffered']
    #allocation11 [shape = 'u8[8192]{0}', space=vmem, size = 0x2000, scoped, tag = 'output window, operand 0, single buffered']
    %12 = vsyncpa [#allocation3], 0
    %13 = vsyncpa [#allocation6], 0
    %14 = vsyncpa [#allocation9], 0
    %15 = vsyncpa [#allocation4], 0
    // Predicated region
    $region2: #{tpu_custom_call.1} parent=1 // pred_check
      _
    $region3: #{tpu_custom_call.1} parent=1 // pred_check_branch
      %17 = sbr.rel (0) target = $region5
    $region4: #{tpu_custom_call.1} parent=1 // pred_region
      %s19 = ssub.s32 256, 256
      %20 = vsyncadd [#allocation3], %s19
      %s21 = sshll.u32 [#allocation2], 4
      %s22 = int_to_ptr.vmem [resolvable:$true] %s21
      %27 = dma.hbm_to_vmem [thread:$0]  %s0, 256, %s22, [#allocation3], 128, 128, 8
    $region5: #{tpu_custom_call.1} parent=1 // pred_fallthru
      _
    // Predicated region
    $region6: #{tpu_custom_call.1} parent=1 // pred_check
      _
    $region7: #{tpu_custom_call.1} parent=1 // pred_check_branch
      %29 = sbr.rel (0) target = $region9
    $region8: #{tpu_custom_call.1} parent=1 // pred_region
      %s31 = ssub.s32 3072, 3072
      %32 = vsyncadd [#allocation6], %s31
      %s33 = sshll.u32 [#allocation5], 4
      %s34 = int_to_ptr.vmem [resolvable:$true] %s33
      %39 = dma.hbm_to_vmem [thread:$0]  %s1, 3072, %s34, [#allocation6], 192, 192, 12
    $region9: #{tpu_custom_call.1} parent=1 // pred_fallthru
      _
    // Predicated region
    $region10: #{tpu_custom_call.1} parent=1 // pred_check
      _
    $region11: #{tpu_custom_call.1} parent=1 // pred_check_branch
      %41 = sbr.rel (0) target = $region13
    $region12: #{tpu_custom_call.1} parent=1 // pred_region
      %s43 = ssub.s32 48, 48
      %44 = vsyncadd [#allocation6], %s43
      %s46 = sshll.u32 [#allocation7], 4
      %s47 = int_to_ptr.vmem [resolvable:$true] %s46
      %49 = dma.hbm_to_vmem [thread:$0]  %s2, 48, %s47, [#allocation6]
    $region13: #{tpu_custom_call.1} parent=1 // pred_fallthru
      _
    // Predicated region
    $region14: #{tpu_custom_call.1} parent=1 // pred_check
      _
    $region15: #{tpu_custom_call.1} parent=1 // pred_check_branch
      %51 = sbr.rel (0) target = $region17
    $region16: #{tpu_custom_call.1} parent=1 // pred_region
      %s53 = ssub.s32 1024, 1024
      %54 = vsyncadd [#allocation9], %s53
      %s55 = sshll.u32 [#allocation8], 4
      %s56 = int_to_ptr.vmem [resolvable:$true] %s55
      %61 = dma.hbm_to_vmem [thread:$0]  %s3, 1024, %s56, [#allocation9], 64, 64, 4
    $region17: #{tpu_custom_call.1} parent=1 // pred_fallthru
      _
    // Predicated region
    $region18: #{tpu_custom_call.1} parent=1 // pred_check
      _
    $region19: #{tpu_custom_call.1} parent=1 // pred_check_branch
      %63 = sbr.rel (0) target = $region21
    $region20: #{tpu_custom_call.1} parent=1 // pred_region
      _
    $region21: #{tpu_custom_call.1} parent=1 // pred_fallthru
      _
    // Predicated region
    $region22: #{tpu_custom_call.1} parent=1 // pred_check
      _
    $region23: #{tpu_custom_call.1} parent=1 // pred_check_branch
      %65 = sbr.rel (0) target = $region25
    $region24: #{tpu_custom_call.1} parent=1 // pred_region
      _
    $region25: #{tpu_custom_call.1} parent=1 // pred_fallthru
      _
    // Predicated region
    $region26: #{tpu_custom_call.1} parent=1 // pred_check
      _
    $region27: #{tpu_custom_call.1} parent=1 // pred_check_branch
      %67 = sbr.rel (0) target = $region29
    $region28: #{tpu_custom_call.1} parent=1 // pred_region
      %s69 = ssub.s32 256, 256
      %70 = vsyncadd [#allocation9], %s69
      %s71 = sshll.u32 [#allocation10], 4
      %s72 = int_to_ptr.vmem [resolvable:$true] %s71
      %77 = dma.hbm_to_vmem [thread:$0]  %s6, 256, %s72, [#allocation9], 128, 128, 8
    $region29: #{tpu_custom_call.1} parent=1 // pred_fallthru
      _
    // Predicated region
    $region30: #{tpu_custom_call.1} parent=1 // pred_check
      _
    $region31: #{tpu_custom_call.1} parent=1 // pred_check_branch
      %79 = sbr.rel (0) target = $region33
    $region32: #{tpu_custom_call.1} parent=1 // pred_region
      %80 = dma.done [#allocation3], 256
    $region33: #{tpu_custom_call.1} parent=1 // pred_fallthru
      _
    // Predicated region
    $region34: #{tpu_custom_call.1} parent=1 // pred_check
      _
    $region35: #{tpu_custom_call.1} parent=1 // pred_check_branch
      %82 = sbr.rel (0) target = $region37
    $region36: #{tpu_custom_call.1} parent=1 // pred_region
      %83 = dma.done [#allocation6], 3072
    $region37: #{tpu_custom_call.1} parent=1 // pred_fallthru
      _
    // Predicated region
    $region38: #{tpu_custom_call.1} parent=1 // pred_check
      _
    $region39: #{tpu_custom_call.1} parent=1 // pred_check_branch
      %85 = sbr.rel (0) target = $region41
    $region40: #{tpu_custom_call.1} parent=1 // pred_region
      %86 = dma.done [#allocation6], 48
    $region41: #{tpu_custom_call.1} parent=1 // pred_fallthru
      _
    // Predicated region
    $region42: #{tpu_custom_call.1} parent=1 // pred_check
      _
    $region43: #{tpu_custom_call.1} parent=1 // pred_check_branch
      %88 = sbr.rel (0) target = $region45
    $region44: #{tpu_custom_call.1} parent=1 // pred_region
      %89 = dma.done [#allocation9], 1024
    $region45: #{tpu_custom_call.1} parent=1 // pred_fallthru
      _
    // Predicated region
    $region46: #{tpu_custom_call.1} parent=1 // pred_check
      _
    $region47: #{tpu_custom_call.1} parent=1 // pred_check_branch
      %91 = sbr.rel (0) target = $region49
    $region48: #{tpu_custom_call.1} parent=1 // pred_region
      %92 = dma.done [#allocation9], 256
    $region49: #{tpu_custom_call.1} parent=1 // pred_fallthru
      _
    %v94 = vld [vmem:[#allocation2] sm:$0xff]
    %v95 = vld [vmem:[#allocation2 + $0x8] sm:$0xff]
    %96 = vadd.xlane.f32.xlu0 %v94
    %v97 = vpop.xlane.xlu0 %96
    %98 = vadd.xlane.f32.xlu0 %v95
    %v99 = vpop.xlane.xlu0 %98
    %v100 = vmul.f32 %v97, 0.03125
    %v101 = vmul.f32 %v99, 0.03125
    %v102 = vmul.f32 %v94, %v94
    %v103 = vmul.f32 %v95, %v95
    %104 = vadd.xlane.f32.xlu0 %v102
    %v105 = vpop.xlane.xlu0 %104
    %106 = vadd.xlane.f32.xlu0 %v103
    %v107 = vpop.xlane.xlu0 %106
    %v108 = vmul.f32 %v105, 0.03125
    %v109 = vmul.f32 %v107, 0.03125
    %v110 = vmul.f32 %v100, %v100
    %v111 = vmul.f32 %v101, %v101
    %v112 = vsub.f32 %v108, %v110
    %v113 = vsub.f32 %v109, %v111
    %v114 = vsub.f32 %v94, %v100
    %v115 = vsub.f32 %v95, %v101
    %v116 = vadd.f32 %v112, 1e-05
    %v117 = vadd.f32 %v113, 1e-05
    %v118 = vrsqrt.pop %v116
    %v119 = vrsqrt.pop %v117
    %v120 = vmul.f32 %v114, %v118
    %v121 = vmul.f32 %v115, %v119
    %v122 = vpack.c.bf16 %v121, %v120
    %v123 = vld [vmem:[#allocation5] sm:$0xff]
    %v124 = vld [vmem:[#allocation5 + $0x8] sm:$0xf]
    %v125 = vld [vmem:[#allocation5 + $0xc] sm:$0xff]
    %v126 = vld [vmem:[#allocation5 + $0x14] sm:$0xf]
    %v127 = vld [vmem:[#allocation5 + $0x18] sm:$0xff]
    %v128 = vld [vmem:[#allocation5 + $0x20] sm:$0xf]
    %v129 = vld [vmem:[#allocation5 + $0x24] sm:$0xff]
    %v130 = vld [vmem:[#allocation5 + $0x2c] sm:$0xf]
    %v131 = vld [vmem:[#allocation5 + $0x30] sm:$0xff]
    %v132 = vld [vmem:[#allocation5 + $0x38] sm:$0xf]
    %v133 = vld [vmem:[#allocation5 + $0x3c] sm:$0xff]
    %v134 = vld [vmem:[#allocation5 + $0x44] sm:$0xf]
    %v135 = vld [vmem:[#allocation5 + $0x48] sm:$0xff]
    %v136 = vld [vmem:[#allocation5 + $0x50] sm:$0xf]
    %v137 = vld [vmem:[#allocation5 + $0x54] sm:$0xff]
    %v138 = vld [vmem:[#allocation5 + $0x5c] sm:$0xf]
    %v139 = vld [vmem:[#allocation5 + $0x60] sm:$0xff]
    %v140 = vld [vmem:[#allocation5 + $0x68] sm:$0xf]
    %v141 = vld [vmem:[#allocation5 + $0x6c] sm:$0xff]
    %v142 = vld [vmem:[#allocation5 + $0x74] sm:$0xf]
    %v143 = vld [vmem:[#allocation5 + $0x78] sm:$0xff]
    %v144 = vld [vmem:[#allocation5 + $0x80] sm:$0xf]
    %v145 = vld [vmem:[#allocation5 + $0x84] sm:$0xff]
    %v146 = vld [vmem:[#allocation5 + $0x8c] sm:$0xf]
    %v147 = vld [vmem:[#allocation5 + $0x90] sm:$0xff]
    %v148 = vld [vmem:[#allocation5 + $0x98] sm:$0xf]
    %v149 = vld [vmem:[#allocation5 + $0x9c] sm:$0xff]
    %v150 = vld [vmem:[#allocation5 + $0xa4] sm:$0xf]
    %v151 = vld [vmem:[#allocation5 + $0xa8] sm:$0xff]
    %v152 = vld [vmem:[#allocation5 + $0xb0] sm:$0xf]
    %v153 = vld [vmem:[#allocation5 + $0xb4] sm:$0xff]
    %v154 = vld [vmem:[#allocation5 + $0xbc] sm:$0xf]
    %v155 = vld [vmem:[#allocation7] sm:$0x7]
    %v157 = vlaneseq
    %v158 = vshrl.u32 %v157, 7
    %v159 = vsub.s32 0, %v158
    %v160 = vrot.slane %v155, %v159
    %v161 = vlaneseq
    %v162 = vshrl.u32 %v161, 7
    %v163 = vsub.s32 1, %v162
    %v164 = vrot.slane %v155, %v163
    %v165 = vlaneseq
    %v166 = vshrl.u32 %v165, 7
    %v167 = vsub.s32 2, %v166
    %v168 = vrot.slane %v155, %v167
    %v204 = vunpack.c.l.b16 %v123
    %v205 = vunpack.c.h.b16 %v123
    %v206 = vunpack.c.l.b16 %v124
    %v207 = vunpack.c.l.b16 %v125
    %v208 = vunpack.c.h.b16 %v125
    %v209 = vunpack.c.l.b16 %v126
    %v210 = vunpack.c.l.b16 %v127
    %v211 = vunpack.c.h.b16 %v127
    %v212 = vunpack.c.l.b16 %v128
    %v213 = vunpack.c.l.b16 %v129
    %v214 = vunpack.c.h.b16 %v129
    %v215 = vunpack.c.l.b16 %v130
    %v216 = vunpack.c.l.b16 %v131
    %v217 = vunpack.c.h.b16 %v131
    %v218 = vunpack.c.l.b16 %v132
    %v219 = vunpack.c.l.b16 %v133
    %v220 = vunpack.c.h.b16 %v133
    %v221 = vunpack.c.l.b16 %v134
    %v222 = vunpack.c.l.b16 %v135
    %v223 = vunpack.c.h.b16 %v135
    %v224 = vunpack.c.l.b16 %v136
    %v225 = vunpack.c.l.b16 %v137
    %v226 = vunpack.c.h.b16 %v137
    %v227 = vunpack.c.l.b16 %v138
    %v228 = vunpack.c.l.b16 %v139
    %v229 = vunpack.c.h.b16 %v139
    %v230 = vunpack.c.l.b16 %v140
    %v231 = vunpack.c.l.b16 %v141
    %v232 = vunpack.c.h.b16 %v141
    %v233 = vunpack.c.l.b16 %v142
    %v234 = vunpack.c.l.b16 %v143
    %v235 = vunpack.c.h.b16 %v143
    %v236 = vunpack.c.l.b16 %v144
    %v237 = vunpack.c.l.b16 %v145
    %v238 = vunpack.c.h.b16 %v145
    %v239 = vunpack.c.l.b16 %v146
    %v240 = vunpack.c.l.b16 %v147
    %v241 = vunpack.c.h.b16 %v147
    %v242 = vunpack.c.l.b16 %v148
    %v243 = vunpack.c.l.b16 %v149
    %v244 = vunpack.c.h.b16 %v149
    %v245 = vunpack.c.l.b16 %v150
    %v246 = vunpack.c.l.b16 %v151
    %v247 = vunpack.c.h.b16 %v151
    %v248 = vunpack.c.l.b16 %v152
    %v249 = vunpack.c.l.b16 %v153
    %v250 = vunpack.c.h.b16 %v153
    %v251 = vunpack.c.l.b16 %v154
    %v252 = vpack.c.b16 %v207, %v204
    %v253 = vpack.c.b16 %v208, %v205
    %v254 = vpack.c.b16 %v209, %v206
    %v255 = vpack.c.b16 %v213, %v210
    %v256 = vpack.c.b16 %v214, %v211
    %v257 = vpack.c.b16 %v215, %v212
    %v258 = vpack.c.b16 %v219, %v216
    %v259 = vpack.c.b16 %v220, %v217
    %v260 = vpack.c.b16 %v221, %v218
    %v261 = vpack.c.b16 %v225, %v222
    %v262 = vpack.c.b16 %v226, %v223
    %v263 = vpack.c.b16 %v227, %v224
    %v264 = vpack.c.b16 %v231, %v228
    %v265 = vpack.c.b16 %v232, %v229
    %v266 = vpack.c.b16 %v233, %v230
    %v267 = vpack.c.b16 %v237, %v234
    %v268 = vpack.c.b16 %v238, %v235
    %v269 = vpack.c.b16 %v239, %v236
    %v270 = vpack.c.b16 %v243, %v240
    %v271 = vpack.c.b16 %v244, %v241
    %v272 = vpack.c.b16 %v245, %v242
    %v273 = vpack.c.b16 %v249, %v246
    %v274 = vpack.c.b16 %v250, %v247
    %v275 = vpack.c.b16 %v251, %v248
    %300 = vmatprep.subr.bf16.mxu0 %v253
    %301 = vmatpush1.bf16.msra.mxu0 %v252
    %302 = vmatprep.subr.bf16.mxu0 %v256
    %303 = vmatpush1.bf16.msra.mxu0 %v255
    %304 = vmatprep.subr.bf16.mxu0 %v259
    %305 = vmatpush1.bf16.msra.mxu0 %v258
    %306 = vmatprep.subr.bf16.mxu0 %v262
    %307 = vmatpush1.bf16.msra.mxu0 %v261
    %308 = vmatprep.subr.bf16.mxu0 %v265
    %309 = vmatpush1.bf16.msra.mxu0 %v264
    %310 = vmatprep.subr.bf16.mxu0 %v268
    %311 = vmatpush1.bf16.msra.mxu0 %v267
    %312 = vmatprep.subr.bf16.mxu0 %v271
    %313 = vmatpush1.bf16.msra.mxu0 %v270
    %314 = vmatprep.subr.bf16.mxu0 %v274
    %315 = vmatpush1.bf16.msra.mxu0 %v273
    %316 = vmatprep.subr.bf16.mxu0 0
    %317 = vmatpush1.bf16.msra.mxu0 0
    %318 = vmatprep.subr.bf16.mxu0 0
    %319 = vmatpush1.bf16.msra.mxu0 0
    %320 = vmatprep.subr.bf16.mxu0 0
    %321 = vmatpush1.bf16.msra.mxu0 0
    %322 = vmatprep.subr.bf16.mxu0 0
    %323 = vmatpush1.bf16.msra.mxu0 0
    %324 = vmatprep.subr.bf16.mxu0 0
    %325 = vmatpush1.bf16.msra.mxu0 0
    %326 = vmatprep.subr.bf16.mxu0 0
    %327 = vmatpush1.bf16.msra.mxu0 0
    %328 = vmatprep.subr.bf16.mxu0 0
    %329 = vmatpush1.bf16.msra.mxu0 0
    %330 = vmatprep.subr.bf16.mxu0 0
    %331 = vmatpush1.bf16.msra.mxu0 0
    %332 = vmatprep.mubr.bf16.mxu0 0
    %333 = vmatmul.mubr.bf16.gmra.mrb[0].mxu0 %v122
    %v334 = vpop.f32.mrb[0].mxu0
    %v335 = vadd.f32 %v160, %v334
    %v336 = vpop.f32.mrb[0].mxu0
    %v337 = vadd.f32 %v164, %v336
    %v338 = vpop.f32.mrb[0].mxu0
    %v339 = vadd.f32 %v160, %v338
    %v340 = vpop.f32.mrb[0].mxu0
    %v341 = vadd.f32 %v164, %v340
    %342 = vdwg.mxu0
    %343 = vmatprep.subr.bf16.mxu0 0
    %344 = vmatpush1.bf16.msra.mxu0 %v254
    %345 = vmatprep.subr.bf16.mxu0 0
    %346 = vmatpush1.bf16.msra.mxu0 %v257
    %347 = vmatprep.subr.bf16.mxu0 0
    %348 = vmatpush1.bf16.msra.mxu0 %v260
    %349 = vmatprep.subr.bf16.mxu0 0
    %350 = vmatpush1.bf16.msra.mxu0 %v263
    %351 = vmatprep.subr.bf16.mxu0 0
    %352 = vmatpush1.bf16.msra.mxu0 %v266
    %353 = vmatprep.subr.bf16.mxu0 0
    %354 = vmatpush1.bf16.msra.mxu0 %v269
    %355 = vmatprep.subr.bf16.mxu0 0
    %356 = vmatpush1.bf16.msra.mxu0 %v272
    %357 = vmatprep.subr.bf16.mxu0 0
    %358 = vmatpush1.bf16.msra.mxu0 %v275
    %359 = vmatprep.subr.bf16.mxu0 0
    %360 = vmatpush1.bf16.msra.mxu0 0
    %361 = vmatprep.subr.bf16.mxu0 0
    %362 = vmatpush1.bf16.msra.mxu0 0
    %363 = vmatprep.subr.bf16.mxu0 0
    %364 = vmatpush1.bf16.msra.mxu0 0
    %365 = vmatprep.subr.bf16.mxu0 0
    %366 = vmatpush1.bf16.msra.mxu0 0
    %367 = vmatprep.subr.bf16.mxu0 0
    %368 = vmatpush1.bf16.msra.mxu0 0
    %369 = vmatprep.subr.bf16.mxu0 0
    %370 = vmatpush1.bf16.msra.mxu0 0
    %371 = vmatprep.subr.bf16.mxu0 0
    %372 = vmatpush1.bf16.msra.mxu0 0
    %373 = vmatprep.subr.bf16.mxu0 0
    %374 = vmatpush1.bf16.msra.mxu0 0
    %375 = vmatprep.mubr.bf16.mxu0 0
    %376 = vmatmul.mubr.bf16.gmra.mrb[0].mxu0 %v122
    %v377 = vpop.f32.mrb[0].mxu0
    %v378 = vadd.f32 %v168, %v377
    %v379 = vpop.f32.mrb[0].mxu0
    %v380 = vpop.f32.mrb[0].mxu0
    %v381 = vadd.f32 %v168, %v380
    %v382 = vpop.f32.mrb[0].mxu0
    %383 = vdwg.mxu0
    %v384 = vld [vmem:[%s5] sm:$0xff]
    %v385 = vld [vmem:[%s5 + $0x8] sm:$0xff]
    %v386 = vld [vmem:[#allocation10] sm:$0xff]
    %v387 = vld [vmem:[#allocation10 + $0x8] sm:$0xff]
    %v388 = vmul.f32 %v335, %v384
    %v389 = vmul.f32 %v339, %v385
    %390 = vrot.lane.b32.xlu0 %v335, 64
    %v391 = vpop.permute.xlu0 %390
    %392 = vrot.lane.b32.xlu0 %v339, 64
    %v393 = vpop.permute.xlu0 %392
    %v394 = vmul.f32 %v391, %v386
    %v395 = vmul.f32 %v393, %v387
    %v396 = vadd.f32 %v388, %v394
    %v397 = vadd.f32 %v389, %v395
    %v398 = vmul.f32 %v337, %v384
    %v399 = vmul.f32 %v341, %v385
    %400 = vrot.lane.b32.xlu0 %v337, 64
    %v401 = vpop.permute.xlu0 %400
    %402 = vrot.lane.b32.xlu0 %v341, 64
    %v403 = vpop.permute.xlu0 %402
    %v404 = vmul.f32 %v401, %v386
    %v405 = vmul.f32 %v403, %v387
    %v406 = vadd.f32 %v398, %v404
    %v407 = vadd.f32 %v399, %v405
    %v408 = vpack.c.bf16 %v396, %v396
    %v409 = vpack.c.bf16 %v397, %v397
    %v410 = vpack.c.bf16 %v406, %v406
    %v411 = vpack.c.bf16 %v407, %v407
    %v412 = vpack.c.bf16 %v378, %v378
    %v413 = vpack.c.bf16 %v381, %v381
    %414 = vmatprep.subr.bf16.mxu0 0
    %415 = vmatpush1.bf16.xpose.msra.mxu0 %v410
    %416 = vmatprep.subr.bf16.mxu0 0
    %417 = vmatpush1.bf16.xpose.msra.mxu0 0
    %418 = vmatprep.subr.bf16.mxu0 0
    %419 = vmatpush1.bf16.xpose.msra.mxu0 0
    %420 = vmatprep.subr.bf16.mxu0 0
    %421 = vmatpush1.bf16.xpose.msra.mxu0 0
    %422 = vmatprep.subr.bf16.mxu0 0
    %423 = vmatpush1.bf16.xpose.msra.mxu0 0
    %424 = vmatprep.subr.bf16.mxu0 0
    %425 = vmatpush1.bf16.xpose.msra.mxu0 0
    %426 = vmatprep.subr.bf16.mxu0 0
    %427 = vmatpush1.bf16.xpose.msra.mxu0 0
    %428 = vmatprep.subr.bf16.mxu0 0
    %429 = vmatpush1.bf16.xpose.msra.mxu0 0
    %430 = vmatprep.subr.bf16.mxu0 0
    %431 = vmatpush1.bf16.xpose.msra.mxu0 0
    %432 = vmatprep.subr.bf16.mxu0 0
    %433 = vmatpush1.bf16.xpose.msra.mxu0 0
    %434 = vmatprep.subr.bf16.mxu0 0
    %435 = vmatpush1.bf16.xpose.msra.mxu0 0
    %436 = vmatprep.subr.bf16.mxu0 0
    %437 = vmatpush1.bf16.xpose.msra.mxu0 0
    %438 = vmatprep.subr.bf16.mxu0 0
    %439 = vmatpush1.bf16.xpose.msra.mxu0 0
    %440 = vmatprep.subr.bf16.mxu0 0
    %441 = vmatpush1.bf16.xpose.msra.mxu0 0
    %442 = vmatprep.subr.bf16.mxu0 0
    %443 = vmatpush1.bf16.xpose.msra.mxu0 0
    %444 = vmatprep.subr.bf16.mxu0 0
    %445 = vmatpush1.bf16.xpose.msra.mxu0 0
    %446 = vmatprep.mubr.bf16.mxu0 0
    %447 = vmatmul.mubr.bf16.gmra.mrb[0].mxu0 %v408
    %v448 = vpop.f32.mrb[0].mxu0
    %v449 = vadd.f32 0.0, %v448
    %v450 = vpop.f32.mrb[0].mxu0
    %v451 = vpop.f32.mrb[0].mxu0
    %v452 = vpop.f32.mrb[0].mxu0
    %453 = vdwg.mxu0
    %454 = vmatprep.subr.bf16.mxu0 0
    %455 = vmatpush1.bf16.xpose.msra.mxu0 %v411
    %456 = vmatprep.subr.bf16.mxu0 0
    %457 = vmatpush1.bf16.xpose.msra.mxu0 0
    %458 = vmatprep.subr.bf16.mxu0 0
    %459 = vmatpush1.bf16.xpose.msra.mxu0 0
    %460 = vmatprep.subr.bf16.mxu0 0
    %461 = vmatpush1.bf16.xpose.msra.mxu0 0
    %462 = vmatprep.subr.bf16.mxu0 0
    %463 = vmatpush1.bf16.xpose.msra.mxu0 0
    %464 = vmatprep.subr.bf16.mxu0 0
    %465 = vmatpush1.bf16.xpose.msra.mxu0 0
    %466 = vmatprep.subr.bf16.mxu0 0
    %467 = vmatpush1.bf16.xpose.msra.mxu0 0
    %468 = vmatprep.subr.bf16.mxu0 0
    %469 = vmatpush1.bf16.xpose.msra.mxu0 0
    %470 = vmatprep.subr.bf16.mxu0 0
    %471 = vmatpush1.bf16.xpose.msra.mxu0 0
    %472 = vmatprep.subr.bf16.mxu0 0
    %473 = vmatpush1.bf16.xpose.msra.mxu0 0
    %474 = vmatprep.subr.bf16.mxu0 0
    %475 = vmatpush1.bf16.xpose.msra.mxu0 0
    %476 = vmatprep.subr.bf16.mxu0 0
    %477 = vmatpush1.bf16.xpose.msra.mxu0 0
    %478 = vmatprep.subr.bf16.mxu0 0
    %479 = vmatpush1.bf16.xpose.msra.mxu0 0
    %480 = vmatprep.subr.bf16.mxu0 0
    %481 = vmatpush1.bf16.xpose.msra.mxu0 0
    %482 = vmatprep.subr.bf16.mxu0 0
    %483 = vmatpush1.bf16.xpose.msra.mxu0 0
    %484 = vmatprep.subr.bf16.mxu0 0
    %485 = vmatpush1.bf16.xpose.msra.mxu0 0
    %486 = vmatprep.mubr.bf16.mxu0 0
    %487 = vmatmul.mubr.bf16.gmra.mrb[0].mxu0 %v409
    %v488 = vpop.f32.mrb[0].mxu0
    %v489 = vadd.f32 0.0, %v488
    %v490 = vpop.f32.mrb[0].mxu0
    %v491 = vpop.f32.mrb[0].mxu0
    %v492 = vpop.f32.mrb[0].mxu0
    %493 = vdwg.mxu0
    %vm494 = vcmask 64512
    %v495 = vsel %vm494, %v449, -inf
    %496 = vmax.xlane.f32.xlu0 %v495
    %v497 = vpop.xlane.xlu0 %496
    %v498 = vsel %vm494, %v489, -inf
    %499 = vmax.xlane.f32.xlu0 %v498
    %v500 = vpop.xlane.xlu0 %499
    %v501 = vsub.f32 %v449, %v497
    %v502 = vsub.f32 %v489, %v500
    %v503 = vmul.f32 %v501, 1.442695
    %v504 = vpow.pop %v503
    %v505 = vmul.f32 %v502, 1.442695
    %v506 = vpow.pop %v505
    %v507 = vsel %vm494, %v504, 0.0
    %508 = vadd.xlane.f32.xlu0 %v507
    %v509 = vpop.xlane.xlu0 %508
    %v510 = vsel %vm494, %v506, 0.0
    %511 = vadd.xlane.f32.xlu0 %v510
    %v512 = vpop.xlane.xlu0 %511
    %v513 = vrcp.pop %v509
    %v514 = vrcp.pop %v512
    %v515 = vmul.f32 %v504, %v513
    %v516 = vmul.f32 %v506, %v514
    %v517 = vpack.c.bf16 %v515, %v515
    %v518 = vpack.c.bf16 %v516, %v516
    %v520 = vsel %vm494, %v517, 0
    %vm522 = vcmask 1043456
    %v524 = vsel %vm522, %v412, 0
    %526 = vmatprep.subr.bf16.mxu0 0
    %527 = vmatpush1.bf16.msra.mxu0 %v524
    %528 = vmatprep.subr.bf16.mxu0 0
    %529 = vmatpush1.bf16.msra.mxu0 0
    %530 = vmatprep.subr.bf16.mxu0 0
    %531 = vmatpush1.bf16.msra.mxu0 0
    %532 = vmatprep.subr.bf16.mxu0 0
    %533 = vmatpush1.bf16.msra.mxu0 0
    %534 = vmatprep.subr.bf16.mxu0 0
    %535 = vmatpush1.bf16.msra.mxu0 0
    %536 = vmatprep.subr.bf16.mxu0 0
    %537 = vmatpush1.bf16.msra.mxu0 0
    %538 = vmatprep.subr.bf16.mxu0 0
    %539 = vmatpush1.bf16.msra.mxu0 0
    %540 = vmatprep.subr.bf16.mxu0 0
    %541 = vmatpush1.bf16.msra.mxu0 0
    %542 = vmatprep.subr.bf16.mxu0 0
    %543 = vmatpush1.bf16.msra.mxu0 0
    %544 = vmatprep.subr.bf16.mxu0 0
    %545 = vmatpush1.bf16.msra.mxu0 0
    %546 = vmatprep.subr.bf16.mxu0 0
    %547 = vmatpush1.bf16.msra.mxu0 0
    %548 = vmatprep.subr.bf16.mxu0 0
    %549 = vmatpush1.bf16.msra.mxu0 0
    %550 = vmatprep.subr.bf16.mxu0 0
    %551 = vmatpush1.bf16.msra.mxu0 0
    %552 = vmatprep.subr.bf16.mxu0 0
    %553 = vmatpush1.bf16.msra.mxu0 0
    %554 = vmatprep.subr.bf16.mxu0 0
    %555 = vmatpush1.bf16.msra.mxu0 0
    %556 = vmatprep.subr.bf16.mxu0 0
    %557 = vmatpush1.bf16.msra.mxu0 0
    %558 = vmatprep.mubr.bf16.mxu0 0
    %559 = vmatmul.mubr.bf16.gmra.mrb[0].mxu0 %v520
    %v560 = vpop.f32.mrb[0].mxu0
    %v561 = vadd.f32 0.0, %v560
    %v562 = vpop.f32.mrb[0].mxu0
    %v563 = vpop.f32.mrb[0].mxu0
    %v564 = vpop.f32.mrb[0].mxu0
    %565 = vdwg.mxu0
    %v567 = vsel %vm494, %v518, 0
    %v570 = vsel %vm522, %v413, 0
    %572 = vmatprep.subr.bf16.mxu0 0
    %573 = vmatpush1.bf16.msra.mxu0 %v570
    %574 = vmatprep.subr.bf16.mxu0 0
    %575 = vmatpush1.bf16.msra.mxu0 0
    %576 = vmatprep.subr.bf16.mxu0 0
    %577 = vmatpush1.bf16.msra.mxu0 0
    %578 = vmatprep.subr.bf16.mxu0 0
    %579 = vmatpush1.bf16.msra.mxu0 0
    %580 = vmatprep.subr.bf16.mxu0 0
    %581 = vmatpush1.bf16.msra.mxu0 0
    %582 = vmatprep.subr.bf16.mxu0 0
    %583 = vmatpush1.bf16.msra.mxu0 0
    %584 = vmatprep.subr.bf16.mxu0 0
    %585 = vmatpush1.bf16.msra.mxu0 0
    %586 = vmatprep.subr.bf16.mxu0 0
    %587 = vmatpush1.bf16.msra.mxu0 0
    %588 = vmatprep.subr.bf16.mxu0 0
    %589 = vmatpush1.bf16.msra.mxu0 0
    %590 = vmatprep.subr.bf16.mxu0 0
    %591 = vmatpush1.bf16.msra.mxu0 0
    %592 = vmatprep.subr.bf16.mxu0 0
    %593 = vmatpush1.bf16.msra.mxu0 0
    %594 = vmatprep.subr.bf16.mxu0 0
    %595 = vmatpush1.bf16.msra.mxu0 0
    %596 = vmatprep.subr.bf16.mxu0 0
    %597 = vmatpush1.bf16.msra.mxu0 0
    %598 = vmatprep.subr.bf16.mxu0 0
    %599 = vmatpush1.bf16.msra.mxu0 0
    %600 = vmatprep.subr.bf16.mxu0 0
    %601 = vmatpush1.bf16.msra.mxu0 0
    %602 = vmatprep.subr.bf16.mxu0 0
    %603 = vmatpush1.bf16.msra.mxu0 0
    %604 = vmatprep.mubr.bf16.mxu0 0
    %605 = vmatmul.mubr.bf16.gmra.mrb[0].mxu0 %v567
    %v606 = vpop.f32.mrb[0].mxu0
    %v607 = vadd.f32 0.0, %v606
    %v608 = vpop.f32.mrb[0].mxu0
    %v609 = vpop.f32.mrb[0].mxu0
    %v610 = vpop.f32.mrb[0].mxu0
    %611 = vdwg.mxu0
    %v612 = vpack.c.bf16 %v607, %v561
    %v613 = vld [vmem:[#allocation8] sm:$0xf]
    %v614 = vld [vmem:[#allocation8 + $0x4] sm:$0xf]
    %v615 = vld [vmem:[#allocation8 + $0x8] sm:$0xf]
    %v616 = vld [vmem:[#allocation8 + $0xc] sm:$0xf]
    %v617 = vld [vmem:[#allocation8 + $0x10] sm:$0xf]
    %v618 = vld [vmem:[#allocation8 + $0x14] sm:$0xf]
    %v619 = vld [vmem:[#allocation8 + $0x18] sm:$0xf]
    %v620 = vld [vmem:[#allocation8 + $0x1c] sm:$0xf]
    %v621 = vld [vmem:[#allocation8 + $0x20] sm:$0xf]
    %v622 = vld [vmem:[#allocation8 + $0x24] sm:$0xf]
    %v623 = vld [vmem:[#allocation8 + $0x28] sm:$0xf]
    %v624 = vld [vmem:[#allocation8 + $0x2c] sm:$0xf]
    %v625 = vld [vmem:[#allocation8 + $0x30] sm:$0xf]
    %v626 = vld [vmem:[#allocation8 + $0x34] sm:$0xf]
    %v627 = vld [vmem:[#allocation8 + $0x38] sm:$0xf]
    %v628 = vld [vmem:[#allocation8 + $0x3c] sm:$0xf]
    %v629 = vld [vmem:[%s4] sm:$0x1]
    %v631 = vlaneseq
    %v632 = vshrl.u32 %v631, 7
    %v633 = vsub.s32 0, %v632
    %v634 = vrot.slane %v629, %v633
    %v652 = vunpack.c.l.b16 %v613
    %v653 = vunpack.c.l.b16 %v614
    %v654 = vunpack.c.l.b16 %v615
    %v655 = vunpack.c.l.b16 %v616
    %v656 = vunpack.c.l.b16 %v617
    %v657 = vunpack.c.l.b16 %v618
    %v658 = vunpack.c.l.b16 %v619
    %v659 = vunpack.c.l.b16 %v620
    %v660 = vunpack.c.l.b16 %v621
    %v661 = vunpack.c.l.b16 %v622
    %v662 = vunpack.c.l.b16 %v623
    %v663 = vunpack.c.l.b16 %v624
    %v664 = vunpack.c.l.b16 %v625
    %v665 = vunpack.c.l.b16 %v626
    %v666 = vunpack.c.l.b16 %v627
    %v667 = vunpack.c.l.b16 %v628
    %v668 = vpack.c.b16 %v653, %v652
    %v669 = vpack.c.b16 %v655, %v654
    %v670 = vpack.c.b16 %v657, %v656
    %v671 = vpack.c.b16 %v659, %v658
    %v672 = vpack.c.b16 %v661, %v660
    %v673 = vpack.c.b16 %v663, %v662
    %v674 = vpack.c.b16 %v665, %v664
    %v675 = vpack.c.b16 %v667, %v666
    %684 = vmatprep.subr.bf16.mxu0 0
    %685 = vmatpush1.bf16.msra.mxu0 %v668
    %686 = vmatprep.subr.bf16.mxu0 0
    %687 = vmatpush1.bf16.msra.mxu0 %v669
    %688 = vmatprep.subr.bf16.mxu0 0
    %689 = vmatpush1.bf16.msra.mxu0 %v670
    %690 = vmatprep.subr.bf16.mxu0 0
    %691 = vmatpush1.bf16.msra.mxu0 %v671
    %692 = vmatprep.subr.bf16.mxu0 0
    %693 = vmatpush1.bf16.msra.mxu0 %v672
    %694 = vmatprep.subr.bf16.mxu0 0
    %695 = vmatpush1.bf16.msra.mxu0 %v673
    %696 = vmatprep.subr.bf16.mxu0 0
    %697 = vmatpush1.bf16.msra.mxu0 %v674
    %698 = vmatprep.subr.bf16.mxu0 0
    %699 = vmatpush1.bf16.msra.mxu0 %v675
    %700 = vmatprep.subr.bf16.mxu0 0
    %701 = vmatpush1.bf16.msra.mxu0 0
    %702 = vmatprep.subr.bf16.mxu0 0
    %703 = vmatpush1.bf16.msra.mxu0 0
    %704 = vmatprep.subr.bf16.mxu0 0
    %705 = vmatpush1.bf16.msra.mxu0 0
    %706 = vmatprep.subr.bf16.mxu0 0
    %707 = vmatpush1.bf16.msra.mxu0 0
    %708 = vmatprep.subr.bf16.mxu0 0
    %709 = vmatpush1.bf16.msra.mxu0 0
    %710 = vmatprep.subr.bf16.mxu0 0
    %711 = vmatpush1.bf16.msra.mxu0 0
    %712 = vmatprep.subr.bf16.mxu0 0
    %713 = vmatpush1.bf16.msra.mxu0 0
    %714 = vmatprep.subr.bf16.mxu0 0
    %715 = vmatpush1.bf16.msra.mxu0 0
    %716 = vmatprep.mubr.bf16.mxu0 0
    %717 = vmatmul.mubr.bf16.gmra.mrb[0].mxu0 %v612
    %v718 = vpop.f32.mrb[0].mxu0
    %v719 = vadd.f32 %v634, %v718
    %v720 = vpop.f32.mrb[0].mxu0
    %v721 = vpop.f32.mrb[0].mxu0
    %v722 = vadd.f32 %v634, %v721
    %v723 = vpop.f32.mrb[0].mxu0
    %724 = vdwg.mxu0
    %725 = vst [vmem:[#allocation11] sm:$0xff] %v719
    %726 = vst [vmem:[#allocation11 + $0x8] sm:$0xff] %v722
    // Predicated region
    $region50: #{tpu_custom_call.1} parent=1 // pred_check
      _
    $region51: #{tpu_custom_call.1} parent=1 // pred_check_branch
      %728 = sbr.rel (0) target = $region53
    $region52: #{tpu_custom_call.1} parent=1 // pred_region
      %s730 = ssub.s32 256, 256
      %731 = vsyncadd [#allocation4], %s730
      %s732 = sshll.u32 [#allocation11], 4
      %s733 = int_to_ptr.vmem [resolvable:$true] %s732
      %738 = dma.vmem_to_hbm [thread:$0]  %s733, 256, %s7, [#allocation4], 128, 128, 8
    $region53: #{tpu_custom_call.1} parent=1 // pred_fallthru
      _
    // Predicated region
    $region54: #{tpu_custom_call.1} parent=1 // pred_check
      _
    $region55: #{tpu_custom_call.1} parent=1 // pred_check_branch
      %740 = sbr.rel (0) target = $region57
    $region56: #{tpu_custom_call.1} parent=1 // pred_region
      %741 = dma.done [#allocation4], 256
    $region57: #{tpu_custom_call.1} parent=1 // pred_fallthru
      _
    %742 = vsyncpa [#allocation3], 1
    %743 = vsyncpa [#allocation6], 1
    %744 = vsyncpa [#allocation9], 1
    %745 = vsyncpa [#allocation4], 1

</llo_original>
